<compile_context>
chip_gen: v6e
topology: v6e:2x2x1
jax: 0.10.0
libtpu: 0.0.40
codegen_flags: <defaults>
</compile_context>

<pallas_src>
import jax
import jax.numpy as jnp
from jax.experimental import pallas as pl
from jax.experimental.pallas import tpu as pltpu


# ----------------------------------------------------------------------------
# Primary path: no-op / alias pass-through (zero in-kernel HBM traffic).
# ----------------------------------------------------------------------------
def _touch_kernel(x_ref, o_ref):
    # Output is aliased onto the input buffer; nothing to compute or copy.
    # touch() pins the (HBM-resident) output to this kernel without moving data.
    del x_ref
    pltpu.touch(o_ref)


def _alias_passthrough(arr):
    return pl.pallas_call(
        _touch_kernel,
        out_shape=jax.ShapeDtypeStruct(arr.shape, arr.dtype),
        in_specs=[pl.BlockSpec(memory_space=pl.ANY)],
        out_specs=pl.BlockSpec(memory_space=pl.ANY),
        input_output_aliases={0: 0},
        compiler_params=pltpu.CompilerParams(has_side_effects=True),
    )(arr)


# ----------------------------------------------------------------------------
# Fallback path: tiled, lane-dense, double-buffered identity copy (aliased).
# Only used if the no-op path fails to lower.
# ----------------------------------------------------------------------------
_COPY_BLOCK_BYTES = 4 * 1024 * 1024   # ~4 MiB per row tile (near HBM roofline)
_COPY_VMEM_LIMIT = 32 * 1024 * 1024   # 4x block (double-buffered in+out) + headroom;
                                      # fits v5e/v6e (128 MiB) and v7x (64 MiB) VMEM.


def _copy_kernel(x_ref, o_ref):
    o_ref[...] = x_ref[...]


def _pick_block_rows(rows, lanes, itemsize):
    """Row-tile size: ~4 MiB, multiple of 8, preferably dividing `rows` evenly."""
    target = max(8, _COPY_BLOCK_BYTES // (lanes * itemsize))
    target -= target % 8
    if rows <= target:
        return rows                       # single full-extent block
    b = target
    while b >= 8:                         # prefer no masked/partial tail tile
        if rows % b == 0:
            return b
        b -= 8
    return target                         # accept a masked tail block


def _tiled_copy(arr):
    total = arr.size
    itemsize = jnp.dtype(arr.dtype).itemsize
    lanes = next(
        (c for c in (8192, 4096, 2048, 1024, 512, 256, 128) if total % c == 0),
        None,
    )

    if lanes is None:
        # Irregular total (not a multiple of 128): single full-extent block.
        # TODO(synk): very large irregular sizes would need a chunked + tail
        # path; only reachable via the fallback for odd-sized tensors.
        flat = jnp.reshape(arr, (1, total))
        out = pl.pallas_call(
            _copy_kernel,
            out_shape=jax.ShapeDtypeStruct((1, total), arr.dtype),
            grid=(),
            in_specs=[pl.BlockSpec((1, total), lambda: (0, 0))],
            out_specs=pl.BlockSpec((1, total), lambda: (0, 0)),
            input_output_aliases={0: 0},
            compiler_params=pltpu.CompilerParams(
                vmem_limit_bytes=_COPY_VMEM_LIMIT),
        )(flat)
        return jnp.reshape(out, arr.shape)

    rows = total // lanes
    block_rows = _pick_block_rows(rows, lanes, itemsize)
    slab = jnp.reshape(arr, (rows, lanes))
    out = pl.pallas_call(
        _copy_kernel,
        out_shape=jax.ShapeDtypeStruct((rows, lanes), arr.dtype),
        grid=(pl.cdiv(rows, block_rows),),
        in_specs=[pl.BlockSpec((block_rows, lanes), lambda i: (i, 0))],
        out_specs=pl.BlockSpec((block_rows, lanes), lambda i: (i, 0)),
        input_output_aliases={0: 0},
        compiler_params=pltpu.CompilerParams(
            dimension_semantics=("parallel",),
            vmem_limit_bytes=_COPY_VMEM_LIMIT),
    )(slab)
    return jnp.reshape(out, arr.shape)


# ----------------------------------------------------------------------------
# torch.squeeze semantics.
# ----------------------------------------------------------------------------
def _squeezed_shape(shape, dim):
    if dim is None:
        return tuple(s for s in shape if s != 1)
    ndim = len(shape)
    if ndim == 0:
        if dim not in (-1, 0):
            raise IndexError(
                f"Dimension out of range (expected to be in range of [-1, 0], "
                f"but got {dim})")
        return ()
    if not (-ndim <= dim < ndim):
        raise IndexError(
            f"Dimension out of range (expected to be in range of "
            f"[{-ndim}, {ndim - 1}], but got {dim})")
    d = dim % ndim
    if shape[d] == 1:
        return tuple(s for i, s in enumerate(shape) if i != d)
    return tuple(shape)


_NOOP_PATH_OK = True


def squeeze(x, dim=None):
    global _NOOP_PATH_OK
    out_shape = _squeezed_shape(x.shape, dim)

    # Removing size-1 dims preserves row-major element order: metadata-only.
    x_view = jnp.reshape(x, out_shape)

    # Degenerate cases: nothing for a kernel to do.
    if x_view.size == 0 or x_view.ndim == 0:
        return x_view

    if _NOOP_PATH_OK:
        try:
            return _alias_passthrough(x_view)
        except Exception:
            # Extremely defensive: fall back to the tiled copy if the
            # zero-traffic path fails to lower on this runtime.
            _NOOP_PATH_OK = False
    return _tiled_copy(x_view)


if __name__ == "__main__":
    key = jax.random.PRNGKey(0)

    # NCHW input with a size-1 channel dim so squeeze actually removes a dim.
    x = jax.random.normal(key, (2, 1, 16, 16), dtype=jnp.float32)

    # dim=None variant (removes all size-1 dims)
    y_all = jax.block_until_ready(squeeze(x, dim=None))
    assert y_all.shape == (2, 16, 16), y_all.shape
    assert jnp.array_equal(y_all, jnp.squeeze(x)), "value mismatch (dim=None)"

    # explicit-dim variant
    y_dim = jax.block_until_ready(squeeze(x, dim=1))
    assert y_dim.shape == (2, 16, 16), y_dim.shape
    assert jnp.array_equal(y_dim, jnp.squeeze(x, axis=1)), "value mismatch (dim=1)"

    # negative dim
    y_neg = jax.block_until_ready(squeeze(x, dim=-3))
    assert y_neg.shape == (2, 16, 16), y_neg.shape
    assert jnp.array_equal(y_neg, jnp.squeeze(x, axis=1)), "value mismatch (dim=-3)"

    # dim pointing at a non-size-1 axis: squeeze is a no-op (torch semantics)
    y_noop = jax.block_until_ready(squeeze(x, dim=0))
    assert y_noop.shape == x.shape, y_noop.shape
    assert jnp.array_equal(y_noop, x), "value mismatch (no-op squeeze)"

    # Irregular (non-multiple-of-128) element count.
    x_odd = jax.random.normal(key, (3, 1, 5, 7), dtype=jnp.float32)
    y_odd = jax.block_until_ready(squeeze(x_odd, dim=1))
    assert y_odd.shape == (3, 5, 7), y_odd.shape
    assert jnp.array_equal(y_odd, jnp.squeeze(x_odd, axis=1)), "value mismatch (odd)"

    # Larger case (4 MiB of f32).
    x_big = jax.random.normal(key, (4, 1, 256, 1024), dtype=jnp.float32)
    y_big = jax.block_until_ready(squeeze(x_big, dim=1))
    assert y_big.shape == (4, 256, 1024), y_big.shape
    assert jnp.array_equal(y_big, jnp.squeeze(x_big, axis=1)), "value mismatch (big)"

    print("KERNEL_OK")
</pallas_src>

<mosaic_0001>
module attributes {stable_mosaic.version = 11 : i64} {
  func.func @_touch_kernel(%arg0: memref<2x16x16xf32, #tpu.memory_space<any>>, %arg1: memref<2x16x16xf32, #tpu.memory_space<any>>) attributes {dimension_semantics = [], scalar_prefetch = 0 : i64, scratch_operands = 0 : i64, tpu.core_type = #tpu.core_type<tc>} {
    return
  }
}

module attributes {stable_mosaic.version = 11 : i64} {
  func.func @_copy_kernel(%arg0: i32, %arg1: memref<1x512xf32, #tpu.memory_space<vmem>>, %arg2: memref<1x512xf32, #tpu.memory_space<vmem>>) attributes {dimension_semantics = [#tpu.dimension_semantics<parallel>], iteration_bounds = array<i64: 1>, scalar_prefetch = 0 : i64, scratch_operands = 0 : i64, tpu.core_type = #tpu.core_type<tc>, window_params = [{transform_indices = @transform_0, window_bounds = array<i64: 1, 512>}, {transform_indices = @transform_1, window_bounds = array<i64: 1, 512>}]} {
    %c0 = arith.constant 0 : index
    %c0_0 = arith.constant 0 : index
    %0 = vector.load %arg1[%c0, %c0_0] : memref<1x512xf32, #tpu.memory_space<vmem>>, vector<1x512xf32>
    %c0_1 = arith.constant 0 : index
    %c0_2 = arith.constant 0 : index
    %1 = vector.load %arg2[%c0_1, %c0_2] : memref<1x512xf32, #tpu.memory_space<vmem>>, vector<1x512xf32>
    tpu.vector_store %arg2[%c0_1, %c0_2], %0 {strides = array<i32>} : memref<1x512xf32, #tpu.memory_space<vmem>>, vector<1x512xf32>,
    return
  }
  func.func @transform_0(%arg0: i32) -> (i32, i32) {
    %c0_i32 = arith.constant 0 : i32
    %c0_i32_0 = arith.constant 0 : i32
    return %arg0, %c0_i32 : i32, i32
  }
  func.func @transform_1(%arg0: i32) -> (i32, i32) {
    %c0_i32 = arith.constant 0 : i32
    %c0_i32_0 = arith.constant 0 : i32
    return %arg0, %c0_i32 : i32, i32
  }
}

</mosaic_0001>

<llo_original>
// kernel: tpu_custom_call.1
$region0: #{tpu_custom_call.1}
  #allocation0 [shape = 'u32[]', space=smem, size = 0x4, offset = 0x4, fixed_abs, tag = 'smem constant byte address 0x4 - core index']
  #allocation1 [shape = 'u32[144,128]{1,0:T(1,128)}', space=vmem, size = 0x12000, scoped, tag = 'internal scratch']
  %s0 = inlined_call_operand.hbm [shape: f32[2,16,16], index: 0, kind: input, shape index: {}, may-alias: {0,1}]
  %s1 = inlined_call_operand.hbm [shape: f32[2,16,16], index: 1, kind: output, shape index: {}, may-alias: {0,1}]
  %s2 = sld [smem:[#allocation0]]
  $region2: #{tpu_custom_call.1} parent=0
    _
  %s4 = ssub.s32 1, %s2
  %s5 = scalar_select 0, %s4, %s2

// kernel: tpu_custom_call.1
$region0: #{tpu_custom_call.1}
  #allocation0 [shape = 'u32[]', space=smem, size = 0x4, offset = 0x4, fixed_abs, tag = 'smem constant byte address 0x4 - core index']
  #allocation1 [shape = 'u32[144,128]{1,0:T(1,128)}', space=vmem, size = 0x12000, scoped, tag = 'internal scratch']
  %s0 = inlined_call_operand.hbm [shape: f32[1,512], index: 0, kind: input, shape index: {}, may-alias: {0,1}]
  %s1 = inlined_call_operand.hbm [shape: f32[1,512], index: 1, kind: output, shape index: {}, may-alias: {0,1}]
  %s2 = sld [smem:[#allocation0]]
  $region18: #{tpu_custom_call.1} parent=0
    _
  %s4 = ssub.s32 1, %s2
  %s5 = scalar_select 0, %s4, %s2
  $region1: #{tpu_custom_call.1} parent=0
    #allocation2 [shape = 'u8[2048]{0}', space=vmem, size = 0x800, scoped, tag = 'input window, operand 0, single buffered']
    #allocation3 [shape = 's32[1]{0}', space=sflag, size = 0x4, scoped, tag = 'scoped memory for tpu_custom_call.1']
    #allocation4 [shape = 's32[1]{0}', space=sflag, size = 0x4, scoped, tag = 'scoped memory for tpu_custom_call.1']
    #allocation5 [shape = 'u8[2048]{0}', space=vmem, size = 0x800, scoped, tag = 'output window, operand 0, single buffered']
    %6 = vsyncpa [#allocation3], 0
    %7 = vsyncpa [#allocation4], 0
    // Predicated region
    $region2: #{tpu_custom_call.1} parent=1 // pred_check
      _
    $region3: #{tpu_custom_call.1} parent=1 // pred_check_branch
      %9 = sbr.rel (0) target = $region5
    $region4: #{tpu_custom_call.1} parent=1 // pred_region
      %s11 = ssub.s32 64, 64
      %12 = vsyncadd [#allocation3], %s11
      %s14 = sshll.u32 [#allocation2], 4
      %s15 = int_to_ptr.vmem [resolvable:$true] %s14
      %17 = dma.hbm_to_vmem [thread:$0]  %s0, 64, %s15, [#allocation3]
    $region5: #{tpu_custom_call.1} parent=1 // pred_fallthru
      _
    // Predicated region
    $region6: #{tpu_custom_call.1} parent=1 // pred_check
      _
    $region7: #{tpu_custom_call.1} parent=1 // pred_check_branch
      %19 = sbr.rel (0) target = $region9
    $region8: #{tpu_custom_call.1} parent=1 // pred_region
      %20 = dma.done [#allocation3], 64
    $region9: #{tpu_custom_call.1} parent=1 // pred_fallthru
      _
    %v21 = vld [vmem:[#allocation2] sm:$0xf]
    %v22 = vlaneseq
    %vm23 = vcmp.ge.s32.totalorder %v22, 0
    %vm24 = vcmp.lt.s32.totalorder %v22, 512
    %vm25 = vmand %vm23, %vm24
    %26 = vst.msk [vmem:[#allocation5] sm:$0xf] %vm25, %v21
    // Predicated region
    $region10: #{tpu_custom_call.1} parent=1 // pred_check
      _
    $region11: #{tpu_custom_call.1} parent=1 // pred_check_branch
      %28 = sbr.rel (0) target = $region13
    $region12: #{tpu_custom_call.1} parent=1 // pred_region
      %s30 = ssub.s32 64, 64
      %31 = vsyncadd [#allocation4], %s30
      %s33 = sshll.u32 [#allocation5], 4
      %s34 = int_to_ptr.vmem [resolvable:$true] %s33
      %36 = dma.vmem_to_hbm [thread:$0]  %s34, 64, %s1, [#allocation4]
    $region13: #{tpu_custom_call.1} parent=1 // pred_fallthru
      _
    // Predicated region
    $region14: #{tpu_custom_call.1} parent=1 // pred_check
      _
    $region15: #{tpu_custom_call.1} parent=1 // pred_check_branch
      %38 = sbr.rel (0) target = $region17
    $region16: #{tpu_custom_call.1} parent=1 // pred_region
      %39 = dma.done [#allocation4], 64
    $region17: #{tpu_custom_call.1} parent=1 // pred_fallthru
      _
    %40 = vsyncpa [#allocation3], 1
    %41 = vsyncpa [#allocation4], 1

</llo_original>
